<compile_context>
chip_gen: v6e
topology: v6e:2x2x1
jax: 0.10.0
libtpu: 0.0.40
codegen_flags: <defaults>
</compile_context>

<pallas_src>
import functools

import jax
import jax.numpy as jnp
from jax.experimental import pallas as pl
from jax.experimental.pallas import tpu as pltpu


def _round_up(x, m):
    return ((x + m - 1) // m) * m


def adapter_kernel(frcn_ref, bbox_ref, wf_ref, wc_ref, b_ref, img_ref, masksum_ref):
    frcn = frcn_ref[...]                      # (tile_r, Df)  bf16
    bbox = bbox_ref[...]                      # (tile_r, Db)  bf16

    # Folded cat-linear:  out = frcn @ Wf1 + bbox @ (Wb @ Wf2) + (bb @ Wf2 + bf)
    out = (jnp.dot(frcn, wf_ref[...], preferred_element_type=jnp.float32)
           + jnp.dot(bbox, wc_ref[...], preferred_element_type=jnp.float32)
           + b_ref[...])                      # bias kept in f32
    img_ref[...] = out.astype(img_ref.dtype)

    # make_mask numerator: sum(|frcn|) per row in f32; "== 0" done in the wrapper.
    masksum_ref[...] = jnp.sum(jnp.abs(frcn.astype(jnp.float32)), axis=-1, keepdims=True)


def base_adapter_forward(frcn_feat, grid_feat, bbox_feat, params, *,
                         tile_r=512, compute_dtype=jnp.bfloat16):
    """VQA-path BaseAdapter.forward. grid_feat is filtered out for 'vqa' (unused)."""
    del grid_feat  # feat_filter('vqa', ...) drops GRID_FEAT
    B, N, Df = frcn_feat.shape
    _, _, Db = bbox_feat.shape
    H = params["b_frcn"].shape[-1]
    R = B * N

    # ---- one-time weight fold (exact, done in f32 in the wrapper) ----
    w_frcn = params["w_frcn1"].astype(jnp.float32)                       # (Df, H)
    w_comb = params["w_bbox"].astype(jnp.float32) @ params["w_frcn2"].astype(jnp.float32)   # (Db, H)
    b_comb = (params["b_bbox"].astype(jnp.float32) @ params["w_frcn2"].astype(jnp.float32)
              + params["b_frcn"].astype(jnp.float32))                    # (1, H)

    # ---- row tiling (pad R up to a multiple of tile_r; padded rows are dropped) ----
    tile_r = _round_up(min(int(tile_r), _round_up(R, 8)), 8)
    Rp = _round_up(R, tile_r)
    num_tiles = Rp // tile_r

    frcn2 = frcn_feat.reshape(R, Df).astype(compute_dtype)
    bbox2 = bbox_feat.reshape(R, Db).astype(compute_dtype)
    if Rp != R:
        frcn2 = jnp.pad(frcn2, ((0, Rp - R), (0, 0)))
        bbox2 = jnp.pad(bbox2, ((0, Rp - R), (0, 0)))

    wf = w_frcn.astype(compute_dtype)
    wc = w_comb.astype(compute_dtype)
    bc = b_comb  # f32

    itemsize = jnp.dtype(compute_dtype).itemsize
    cost = pl.CostEstimate(
        flops=2 * Rp * (Df + Db) * H + Rp * Df,
        transcendentals=0,
        bytes_accessed=(Rp * (Df + Db) * itemsize          # activations in
                        + (Df + Db) * H * itemsize + H * 4  # resident weights + bias
                        + Rp * H * 4 + Rp * 4),             # outputs
    )

    row_spec = lambda d: pl.BlockSpec((tile_r, d), lambda i: (i, 0))
    res_spec = lambda r, c: pl.BlockSpec((r, c), lambda i: (0, 0))   # VMEM-resident across steps

    img_flat, masksum = pl.pallas_call(
        adapter_kernel,
        grid=(num_tiles,),
        in_specs=[
            row_spec(Df),          # frcn rows      (streamed)
            row_spec(Db),          # bbox rows      (streamed)
            res_spec(Df, H),       # W_frcn1        (resident)
            res_spec(Db, H),       # W_bbox @ W_frcn2 (resident)
            res_spec(1, H),        # folded bias, f32 (resident)
        ],
        out_specs=[
            row_spec(H),           # img rows
            row_spec(1),           # per-row |frcn| sum
        ],
        out_shape=(
            jax.ShapeDtypeStruct((Rp, H), jnp.float32),
            jax.ShapeDtypeStruct((Rp, 1), jnp.float32),
        ),
        compiler_params=pltpu.CompilerParams(
            dimension_semantics=("parallel",),          # independent row tiles -> megacore OK
            vmem_limit_bytes=48 * 1024 * 1024,          # > v5e/v6e scoped defaults, < v7x 64 MiB
        ),
        cost_estimate=cost,
    )(frcn2, bbox2, wf, wc, bc)

    img_feat = img_flat[:R].reshape(B, N, H)
    # make_mask: (sum(|feat|, -1) == 0)[:, None, None, :] -> (B, 1, 1, N) bool
    img_feat_mask = (masksum[:R].reshape(B, N) == 0.0)[:, None, None, :]
    return img_feat, img_feat_mask


def init_params(key, frcn_dim, bbox_dim, bbox_emb, hidden):
    """Deterministic PyTorch-Linear-style init (uniform +-1/sqrt(fan_in))."""
    k = jax.random.split(key, 5)
    s1 = 1.0 / jnp.sqrt(bbox_dim)
    s2 = 1.0 / jnp.sqrt(frcn_dim + bbox_emb)
    return {
        "w_bbox":  jax.random.uniform(k[0], (bbox_dim, bbox_emb), jnp.float32, -s1, s1),
        "b_bbox":  jax.random.uniform(k[1], (1, bbox_emb), jnp.float32, -s1, s1),
        # W_frcn split into [frcn_dim, H] (top / frcn part) and [bbox_emb, H] (bottom / bbox part)
        "w_frcn1": jax.random.uniform(k[2], (frcn_dim, hidden), jnp.float32, -s2, s2),
        "w_frcn2": jax.random.uniform(k[3], (bbox_emb, hidden), jnp.float32, -s2, s2),
        "b_frcn":  jax.random.uniform(k[4], (1, hidden), jnp.float32, -s2, s2),
    }


if __name__ == "__main__":
    # Small synthetic config: B=2 images, N=8 regions, frcn_dim=32, bbox_dim=5,
    # BBOXFEAT_EMB_SIZE=16, HIDDEN_SIZE=32.  tile_r=8 so the row grid actually has 2 steps.
    B, N, Df, Db, E, H = 2, 8, 32, 5, 16, 32
    key = jax.random.PRNGKey(0)
    kf, kg, kb, kp = jax.random.split(key, 4)

    frcn_feat = jax.random.normal(kf, (B, N, Df), jnp.float32)
    # zero out the last two regions of image 1 to exercise the padding mask
    frcn_feat = frcn_feat.at[1, -2:, :].set(0.0)
    grid_feat = jax.random.normal(kg, (B, 16, Df), jnp.float32)   # unused on vqa path
    bbox_feat = jax.random.uniform(kb, (B, N, Db), jnp.float32)

    params = init_params(kp, Df, Db, E, H)

    fwd = functools.partial(base_adapter_forward, tile_r=8)
    img_feat, img_feat_mask = fwd(frcn_feat, grid_feat, bbox_feat, params)
    jax.block_until_ready(img_feat)
    jax.block_until_ready(img_feat_mask)

    # sanity vs. plain-JAX f32 reference of the original (un-folded) math;
    # kernel runs bf16 on the MXU with f32 accumulation, so use a bf16-level tolerance.
    bbox_emb = bbox_feat.reshape(-1, Db) @ params["w_bbox"] + params["b_bbox"]
    ref = (jnp.concatenate([frcn_feat.reshape(-1, Df), bbox_emb], axis=-1)
           @ jnp.concatenate([params["w_frcn1"], params["w_frcn2"]], axis=0)
           + params["b_frcn"]).reshape(B, N, H)
    assert jnp.allclose(img_feat, ref, atol=3e-2, rtol=3e-2), \
        float(jnp.max(jnp.abs(img_feat - ref)))
    assert img_feat.shape == (B, N, H)
    assert img_feat_mask.shape == (B, 1, 1, N)
    assert bool(img_feat_mask[1, 0, 0, -1]) and bool(img_feat_mask[1, 0, 0, -2])
    assert not bool(img_feat_mask[0, 0, 0, 0]) and not bool(img_feat_mask[1, 0, 0, 0])

    # TODO(synk): dataset dispatch ('vqa' vs 'clevr') and the abstract *_init hooks are
    # host-side config logic with no kernel equivalent; only the VQA forward is kernelized.

    print("KERNEL_OK")
</pallas_src>

<mosaic_0001>
module attributes {stable_mosaic.version = 11 : i64} {
  func.func @adapter_kernel(%arg0: i32, %arg1: memref<8x32xbf16, #tpu.memory_space<vmem>>, %arg2: memref<8x5xbf16, #tpu.memory_space<vmem>>, %arg3: memref<32x32xbf16, #tpu.memory_space<vmem>>, %arg4: memref<5x32xbf16, #tpu.memory_space<vmem>>, %arg5: memref<1x32xf32, #tpu.memory_space<vmem>>, %arg6: memref<8x32xf32, #tpu.memory_space<vmem>>, %arg7: memref<8x1xf32, #tpu.memory_space<vmem>>) attributes {dimension_semantics = [#tpu.dimension_semantics<parallel>], iteration_bounds = array<i64: 2>, scalar_prefetch = 0 : i64, scratch_operands = 0 : i64, tpu.core_type = #tpu.core_type<tc>, window_params = [{transform_indices = @transform_0, window_bounds = array<i64: 8, 32>}, {transform_indices = @transform_1, window_bounds = array<i64: 8, 5>}, {pipeline_mode = #tpu.pipeline_mode<synchronous>, transform_indices = @transform_2, window_bounds = array<i64: 32, 32>}, {pipeline_mode = #tpu.pipeline_mode<synchronous>, transform_indices = @transform_3, window_bounds = array<i64: 5, 32>}, {pipeline_mode = #tpu.pipeline_mode<synchronous>, transform_indices = @transform_4, window_bounds = array<i64: 1, 32>}, {transform_indices = @transform_5, window_bounds = array<i64: 8, 32>}, {transform_indices = @transform_6, window_bounds = array<i64: 8, 1>}]} {
    %c0 = arith.constant 0 : index
    %c0_0 = arith.constant 0 : index
    %0 = vector.load %arg1[%c0, %c0_0] : memref<8x32xbf16, #tpu.memory_space<vmem>>, vector<8x32xbf16>
    %c0_1 = arith.constant 0 : index
    %c0_2 = arith.constant 0 : index
    %1 = vector.load %arg2[%c0_1, %c0_2] : memref<8x5xbf16, #tpu.memory_space<vmem>>, vector<8x5xbf16>
    %c0_3 = arith.constant 0 : index
    %c0_4 = arith.constant 0 : index
    %2 = vector.load %arg3[%c0_3, %c0_4] : memref<32x32xbf16, #tpu.memory_space<vmem>>, vector<32x32xbf16>
    %cst = arith.constant dense<0.000000e+00> : vector<8x32xf32>
    %3 = tpu.matmul %0, %2, %cst {dimension_numbers = #tpu.dot_dimension_numbers<[1], [0], [0], [1], [0, 0, 1, 1], [], []>} : vector<8x32xbf16>, vector<32x32xbf16>, vector<8x32xf32> -> vector<8x32xf32>
    %c0_5 = arith.constant 0 : index
    %c0_6 = arith.constant 0 : index
    %4 = vector.load %arg4[%c0_5, %c0_6] : memref<5x32xbf16, #tpu.memory_space<vmem>>, vector<5x32xbf16>
    %cst_7 = arith.constant dense<0.000000e+00> : vector<8x32xf32>
    %5 = tpu.matmul %1, %4, %cst_7 {dimension_numbers = #tpu.dot_dimension_numbers<[1], [0], [0], [1], [0, 0, 1, 1], [], []>} : vector<8x5xbf16>, vector<5x32xbf16>, vector<8x32xf32> -> vector<8x32xf32>
    %6 = arith.addf %3, %5 : vector<8x32xf32>
    %c0_8 = arith.constant 0 : index
    %c0_9 = arith.constant 0 : index
    %7 = vector.load %arg5[%c0_8, %c0_9] : memref<1x32xf32, #tpu.memory_space<vmem>>, vector<1x32xf32>
    %8 = vector.broadcast %7 : vector<1x32xf32> to vector<8x32xf32>
    %9 = arith.addf %6, %8 : vector<8x32xf32>
    %c0_10 = arith.constant 0 : index
    %c0_11 = arith.constant 0 : index
    %10 = vector.load %arg6[%c0_10, %c0_11] : memref<8x32xf32, #tpu.memory_space<vmem>>, vector<8x32xf32>
    tpu.vector_store %arg6[%c0_10, %c0_11], %9 {strides = array<i32>} : memref<8x32xf32, #tpu.memory_space<vmem>>, vector<8x32xf32>,
    %11 = arith.extf %0 : vector<8x32xbf16> to vector<8x32xf32>
    %12 = math.absf %11 : vector<8x32xf32>
    %cst_12 = arith.constant dense<0.000000e+00> : vector<8xf32>
    %13 = vector.multi_reduction <add>, %12, %cst_12 [1] : vector<8x32xf32> to vector<8xf32>
    %14 = vector.shape_cast %13 : vector<8xf32> to vector<8x1xf32>
    %c0_13 = arith.constant 0 : index
    %c0_14 = arith.constant 0 : index
    %15 = vector.load %arg7[%c0_13, %c0_14] : memref<8x1xf32, #tpu.memory_space<vmem>>, vector<8x1xf32>
    tpu.vector_store %arg7[%c0_13, %c0_14], %14 {strides = array<i32>} : memref<8x1xf32, #tpu.memory_space<vmem>>, vector<8x1xf32>,
    return
  }
  func.func @transform_0(%arg0: i32) -> (i32, i32) {
    %c0_i32 = arith.constant 0 : i32
    %c0_i32_0 = arith.constant 0 : i32
    return %arg0, %c0_i32 : i32, i32
  }
  func.func @transform_1(%arg0: i32) -> (i32, i32) {
    %c0_i32 = arith.constant 0 : i32
    %c0_i32_0 = arith.constant 0 : i32
    return %arg0, %c0_i32 : i32, i32
  }
  func.func @transform_2(%arg0: i32) -> (i32, i32) {
    %c0_i32 = arith.constant 0 : i32
    %c0_i32_0 = arith.constant 0 : i32
    %c0_i32_1 = arith.constant 0 : i32
    return %c0_i32, %c0_i32_0 : i32, i32
  }
  func.func @transform_3(%arg0: i32) -> (i32, i32) {
    %c0_i32 = arith.constant 0 : i32
    %c0_i32_0 = arith.constant 0 : i32
    %c0_i32_1 = arith.constant 0 : i32
    return %c0_i32, %c0_i32_0 : i32, i32
  }
  func.func @transform_4(%arg0: i32) -> (i32, i32) {
    %c0_i32 = arith.constant 0 : i32
    %c0_i32_0 = arith.constant 0 : i32
    %c0_i32_1 = arith.constant 0 : i32
    return %c0_i32, %c0_i32_0 : i32, i32
  }
  func.func @transform_5(%arg0: i32) -> (i32, i32) {
    %c0_i32 = arith.constant 0 : i32
    %c0_i32_0 = arith.constant 0 : i32
    return %arg0, %c0_i32 : i32, i32
  }
  func.func @transform_6(%arg0: i32) -> (i32, i32) {
    %c0_i32 = arith.constant 0 : i32
    %c0_i32_0 = arith.constant 0 : i32
    return %arg0, %c0_i32 : i32, i32
  }
}

</mosaic_0001>

<llo_original>
// kernel: tpu_custom_call.1
$region0: #{tpu_custom_call.1}
  #allocation0 [shape = 'u32[]', space=smem, size = 0x4, offset = 0x4, fixed_abs, tag = 'smem constant byte address 0x4 - core index']
  #allocation1 [shape = 'u32[144,128]{1,0:T(1,128)}', space=vmem, size = 0x12000, scoped, tag = 'internal scratch']
  %s0 = inlined_call_operand.vmem [shape: bf16[16,32], index: 0, kind: input, shape index: {}]
  %s1 = inlined_call_operand.vmem [shape: bf16[16,5], index: 1, kind: input, shape index: {}]
  %s2 = inlined_call_operand.hbm [shape: bf16[32,32], index: 2, kind: input, shape index: {}]
  %s3 = inlined_call_operand.vmem [shape: bf16[5,32], index: 3, kind: input, shape index: {}]
  %s4 = inlined_call_operand.vmem [shape: f32[1,32], index: 4, kind: input, shape index: {}]
  %s5 = inlined_call_operand.hbm [shape: f32[16,32], index: 5, kind: output, shape index: {0}]
  %s6 = inlined_call_operand.vmem [shape: f32[16,1], index: 6, kind: output, shape index: {1}]
  %7 = xla_tuple %s5, %s6
  %s8 = sld [smem:[#allocation0]]
  $region65: #{tpu_custom_call.1} parent=0
    _
  %s10 = ssub.s32 1, %s8
  %s11 = scalar_select 0, %s10, %s8
  $region1: #{tpu_custom_call.1} parent=0
    #allocation2 [shape = 'u8[8192]{0}', space=vmem, size = 0x2000, scoped, tag = 'input window, operand 2, single buffered']
    #allocation3 [shape = 's32[2]{0}', space=sflag, size = 0x8, scoped, tag = 'scoped memory for tpu_custom_call.1']
    #allocation4 [shape = 's32[2]{0}', space=sflag, size = 0x8, scoped, tag = 'scoped memory for tpu_custom_call.1']
    #allocation5 [shape = 'u8[8192]{0}', space=vmem, size = 0x2000, scoped, tag = 'output window, operand 0']
    %12 = vsyncpa [#allocation3], 0
    %13 = vsyncpa [#allocation4], 0
    %s14 = scalar_lea.sflag [#allocation4], 1
    %15 = vsyncpa %s14, 0
    loop: start=0, step=1, limit=4
    $region2: #{tpu_custom_call.1} parent=1 // loop_pre_header
      _
    $region3: #{tpu_custom_call.1} parent=1 // loop_header
      %s17 = sphi 0, %s21
      %p18 = scmp.ge.s32.totalorder %s17, 4
      %s27 = sphi 0, %s29
      %s30 = sphi 0, %s27
      %s31 = sphi 0, %s30
      %s47 = sphi 0, %s31
      %s53 = sphi 0, %s55
      %s56 = sphi 0, %s53
      %s57 = sphi 0, %s56
      %s73 = sphi 0, %s57
      %s77 = sphi 0, %s77
      %s79 = sphi 0, %s77
      %s80 = sphi 0, %s79
      %s94 = sphi 0, %s80
      %s98 = sphi 0, %s98
      %s100 = sphi 0, %s98
      %s101 = sphi 0, %s100
      %s115 = sphi 0, %s101
      %s119 = sphi 0, %s119
      %s121 = sphi 0, %s119
      %s122 = sphi 0, %s121
      %s136 = sphi 0, %s122
      %s142 = sphi 0, %s144
      %s145 = sphi 0, %s142
      %s146 = sphi 0, %s145
      %s162 = sphi 0, %s146
      %s168 = sphi 0, %s170
      %s171 = sphi 0, %s168
      %s172 = sphi 0, %s171
      %s188 = sphi 0, %s172
    $region4: #{tpu_custom_call.1} parent=1 // loop_header_branch
      %20 = sbr.rel (%p18) target = $region8
    $region5: #{tpu_custom_call.1} parent=1 // loop_body
      %s22 = ssub.s32 %s17, 1
      %s23 = ssub.s32 %s17, 2
      %s24 = sadd.s32 %s17, 1
      %s25 = ssub.s32 %s17, %s24
      %p26 = scmp.eq.s32.totalorder %s25, 0
      %s28 = sadd.s32 %s27, 1
      %s29 = scalar_select %p26, %s27, %s28
      %p32 = pneg %p26
      %p33 = scmp.eq.s32.totalorder %s17, 1
      %p34 = por %p32, %p33
      %p35 = scmp.ne.s32.totalorder %s27, %s30
      %p36 = scmp.eq.s32.totalorder %s17, 0
      %p37 = por %p35, %p36
      %p38 = scmp.ne.s32.totalorder %s27, %s30
      %p39 = scmp.eq.s32.totalorder %s22, 1
      %p40 = por %p38, %p39
      %p41 = scmp.ne.s32.totalorder %s30, %s31
      %p42 = scmp.eq.s32.totalorder %s22, 0
      %p43 = por %p41, %p42
      %p44 = scmp.ne.s32.totalorder %s30, %s31
      %p45 = scmp.eq.s32.totalorder %s23, 1
      %p46 = por %p44, %p45
      %p48 = scmp.ne.s32.totalorder %s31, %s47
      %p49 = scmp.eq.s32.totalorder %s23, 0
      %p50 = por %p48, %p49
      %s51 = ssub.s32 %s17, %s24
      %p52 = scmp.eq.s32.totalorder %s51, 0
      %s54 = sadd.s32 %s53, 1
      %s55 = scalar_select %p52, %s53, %s54
      %p58 = pneg %p52
      %p59 = scmp.eq.s32.totalorder %s17, 1
      %p60 = por %p58, %p59
      %p61 = scmp.ne.s32.totalorder %s53, %s56
      %p62 = scmp.eq.s32.totalorder %s17, 0
      %p63 = por %p61, %p62
      %p64 = scmp.ne.s32.totalorder %s53, %s56
      %p65 = scmp.eq.s32.totalorder %s22, 1
      %p66 = por %p64, %p65
      %p67 = scmp.ne.s32.totalorder %s56, %s57
      %p68 = scmp.eq.s32.totalorder %s22, 0
      %p69 = por %p67, %p68
      %p70 = scmp.ne.s32.totalorder %s56, %s57
      %p71 = scmp.eq.s32.totalorder %s23, 1
      %p72 = por %p70, %p71
      %p74 = scmp.ne.s32.totalorder %s57, %s73
      %p75 = scmp.eq.s32.totalorder %s23, 0
      %p76 = por %p74, %p75
      %s78 = sadd.s32 %s77, 1
      %p81 = scmp.eq.s32.totalorder %s17, 1
      %p82 = scmp.ne.s32.totalorder %s77, %s79
      %p83 = scmp.eq.s32.totalorder %s17, 0
      %p84 = por %p82, %p83
      %p85 = scmp.ne.s32.totalorder %s77, %s79
      %p86 = scmp.eq.s32.totalorder %s22, 1
      %p87 = por %p85, %p86
      %p88 = scmp.ne.s32.totalorder %s79, %s80
      %p89 = scmp.eq.s32.totalorder %s22, 0
      %p90 = por %p88, %p89
      %p91 = scmp.ne.s32.totalorder %s79, %s80
      %p92 = scmp.eq.s32.totalorder %s23, 1
      %p93 = por %p91, %p92
      %p95 = scmp.ne.s32.totalorder %s80, %s94
      %p96 = scmp.eq.s32.totalorder %s23, 0
      %p97 = por %p95, %p96
      %s99 = sadd.s32 %s98, 1
      %p102 = scmp.eq.s32.totalorder %s17, 1
      %p103 = scmp.ne.s32.totalorder %s98, %s100
      %p104 = scmp.eq.s32.totalorder %s17, 0
      %p105 = por %p103, %p104
      %p106 = scmp.ne.s32.totalorder %s98, %s100
      %p107 = scmp.eq.s32.totalorder %s22, 1
      %p108 = por %p106, %p107
      %p109 = scmp.ne.s32.totalorder %s100, %s101
      %p110 = scmp.eq.s32.totalorder %s22, 0
      %p111 = por %p109, %p110
      %p112 = scmp.ne.s32.totalorder %s100, %s101
      %p113 = scmp.eq.s32.totalorder %s23, 1
      %p114 = por %p112, %p113
      %p116 = scmp.ne.s32.totalorder %s101, %s115
      %p117 = scmp.eq.s32.totalorder %s23, 0
      %p118 = por %p116, %p117
      %s120 = sadd.s32 %s119, 1
      %p123 = scmp.eq.s32.totalorder %s17, 1
      %p124 = scmp.ne.s32.totalorder %s119, %s121
      %p125 = scmp.eq.s32.totalorder %s17, 0
      %p126 = por %p124, %p125
      %p127 = scmp.ne.s32.totalorder %s119, %s121
      %p128 = scmp.eq.s32.totalorder %s22, 1
      %p129 = por %p127, %p128
      %p130 = scmp.ne.s32.totalorder %s121, %s122
      %p131 = scmp.eq.s32.totalorder %s22, 0
      %p132 = por %p130, %p131
      %p133 = scmp.ne.s32.totalorder %s121, %s122
      %p134 = scmp.eq.s32.totalorder %s23, 1
      %p135 = por %p133, %p134
      %p137 = scmp.ne.s32.totalorder %s122, %s136
      %p138 = scmp.eq.s32.totalorder %s23, 0
      %p139 = por %p137, %p138
      %s140 = ssub.s32 %s17, %s24
      %p141 = scmp.eq.s32.totalorder %s140, 0
      %s143 = sadd.s32 %s142, 1
      %s144 = scalar_select %p141, %s142, %s143
      %p147 = pneg %p141
      %p148 = scmp.eq.s32.totalorder %s17, 1
      %p149 = por %p147, %p148
      %p150 = scmp.ne.s32.totalorder %s142, %s145
      %p151 = scmp.eq.s32.totalorder %s17, 0
      %p152 = por %p150, %p151
      %p153 = scmp.ne.s32.totalorder %s142, %s145
      %p154 = scmp.eq.s32.totalorder %s22, 1
      %p155 = por %p153, %p154
      %p156 = scmp.ne.s32.totalorder %s145, %s146
      %p157 = scmp.eq.s32.totalorder %s22, 0
      %p158 = por %p156, %p157
      %p159 = scmp.ne.s32.totalorder %s145, %s146
      %p160 = scmp.eq.s32.totalorder %s23, 1
      %p161 = por %p159, %p160
      %p163 = scmp.ne.s32.totalorder %s146, %s162
      %p164 = scmp.eq.s32.totalorder %s23, 0
      %p165 = por %p163, %p164
      %s166 = ssub.s32 %s17, %s24
      %p167 = scmp.eq.s32.totalorder %s166, 0
      %s169 = sadd.s32 %s168, 1
      %s170 = scalar_select %p167, %s168, %s169
      %p173 = pneg %p167
      %p174 = scmp.eq.s32.totalorder %s17, 1
      %p175 = por %p173, %p174
      %p176 = scmp.ne.s32.totalorder %s168, %s171
      %p177 = scmp.eq.s32.totalorder %s17, 0
      %p178 = por %p176, %p177
      %p179 = scmp.ne.s32.totalorder %s168, %s171
      %p180 = scmp.eq.s32.totalorder %s22, 1
      %p181 = por %p179, %p180
      %p182 = scmp.ne.s32.totalorder %s171, %s172
      %p183 = scmp.eq.s32.totalorder %s22, 0
      %p184 = por %p182, %p183
      %p185 = scmp.ne.s32.totalorder %s171, %s172
      %p186 = scmp.eq.s32.totalorder %s23, 1
      %p187 = por %p185, %p186
      %p189 = scmp.ne.s32.totalorder %s172, %s188
      %p190 = scmp.eq.s32.totalorder %s23, 0
      %p191 = por %p189, %p190
      %p192 = scmp.le.s32.totalorder 1, %s17
      %p193 = scmp.lt.s32.totalorder %s17, 3
      %p194 = pnand %p192, %p193
      %p195 = pneg %p194
      // Predicated region
      $region9: #{tpu_custom_call.1} parent=5 // pred_check
        _
      $region10: #{tpu_custom_call.1} parent=5 // pred_check_branch
        %197 = sbr.rel (%p194) target = $region12
      $region11: #{tpu_custom_call.1} parent=5 // pred_region
        %s198 = ssub.s32 %s17, 1
        // Predicated region
        $region13: #{tpu_custom_call.1} parent=11 // pred_check
          %p199 = pneg %p90
        $region14: #{tpu_custom_call.1} parent=11 // pred_check_branch
          %201 = sbr.rel (%p199) target = $region16
        $region15: #{tpu_custom_call.1} parent=11 // pred_region
          %s203 = ssub.s32 256, 256
          %204 = vsyncadd [#allocation3], %s203
          %s205 = sshll.u32 [#allocation2], 4
          %s206 = int_to_ptr.vmem [resolvable:$true] %s205
          %211 = dma.hbm_to_vmem [thread:$0]  %s2, 256, %s206, [#allocation3], 64, 64, 4
        $region16: #{tpu_custom_call.1} parent=11 // pred_fallthru
          _
        // Predicated region
        $region17: #{tpu_custom_call.1} parent=11 // pred_check
          %p212 = pneg %p111
        $region18: #{tpu_custom_call.1} parent=11 // pred_check_branch
          %214 = sbr.rel (%p212) target = $region20
        $region19: #{tpu_custom_call.1} parent=11 // pred_region
          _
        $region20: #{tpu_custom_call.1} parent=11 // pred_fallthru
          _
        // Predicated region
        $region21: #{tpu_custom_call.1} parent=11 // pred_check
          %p215 = pneg %p132
        $region22: #{tpu_custom_call.1} parent=11 // pred_check_branch
          %217 = sbr.rel (%p215) target = $region24
        $region23: #{tpu_custom_call.1} parent=11 // pred_region
          _
        $region24: #{tpu_custom_call.1} parent=11 // pred_fallthru
          _
      $region12: #{tpu_custom_call.1} parent=5 // pred_fallthru
        _
      %p218 = scmp.lt.s32.totalorder %s17, 2
      // Predicated region
      $region25: #{tpu_custom_call.1} parent=5 // pred_check
        %p219 = pneg %p218
      $region26: #{tpu_custom_call.1} parent=5 // pred_check_branch
        %221 = sbr.rel (%p219) target = $region28
      $region27: #{tpu_custom_call.1} parent=5 // pred_region
        // Predicated region
        $region29: #{tpu_custom_call.1} parent=27 // pred_check
          %p222 = pneg %p37
        $region30: #{tpu_custom_call.1} parent=27 // pred_check_branch
          %224 = sbr.rel (%p222) target = $region32
        $region31: #{tpu_custom_call.1} parent=27 // pred_region
          %p225 = scmp.lt.s32.totalorder %s17, 1
          %s226 = scalar_select %p225, %s17, 1
          %s227 = smul.addr %s226, 4
          %s228 = scalar_lea.vmem %s0, %s227
        $region32: #{tpu_custom_call.1} parent=27 // pred_fallthru
          _
        // Predicated region
        $region33: #{tpu_custom_call.1} parent=27 // pred_check
          %p229 = pneg %p63
        $region34: #{tpu_custom_call.1} parent=27 // pred_check_branch
          %231 = sbr.rel (%p229) target = $region36
        $region35: #{tpu_custom_call.1} parent=27 // pred_region
          %p232 = scmp.lt.s32.totalorder %s17, 1
          %s233 = scalar_select %p232, %s17, 1
          %s234 = smul.addr %s233, 4
          %s235 = scalar_lea.vmem %s1, %s234
        $region36: #{tpu_custom_call.1} parent=27 // pred_fallthru
          _
      $region28: #{tpu_custom_call.1} parent=5 // pred_fallthru
        _
      %p236 = scmp.le.s32.totalorder 1, %s17
      %p237 = scmp.lt.s32.totalorder %s17, 3
      %p238 = pnand %p236, %p237
      %p239 = pneg %p238
      // Predicated region
      $region37: #{tpu_custom_call.1} parent=5 // pred_check
        _
      $region38: #{tpu_custom_call.1} parent=5 // pred_check_branch
        %241 = sbr.rel (%p238) target = $region40
      $region39: #{tpu_custom_call.1} parent=5 // pred_region
        %s242 = ssub.s32 %s17, 1
        // Predicated region
        $region41: #{tpu_custom_call.1} parent=39 // pred_check
          %p243 = pneg %p90
        $region42: #{tpu_custom_call.1} parent=39 // pred_check_branch
          %245 = sbr.rel (%p243) target = $region44
        $region43: #{tpu_custom_call.1} parent=39 // pred_region
          %246 = dma.done [#allocation3], 256
        $region44: #{tpu_custom_call.1} parent=39 // pred_fallthru
          _
        %p247 = scmp.lt.s32.totalorder %s22, 1
        %s248 = scalar_select %p247, %s22, 1
        %s249 = smul.addr %s248, 4
        %s250 = scalar_lea.vmem %s0, %s249
        %p251 = pneg %p43
        %p252 = pneg %p40
        %p253 = scmp.lt.s32.totalorder %s22, 1
        %s254 = scalar_select %p253, %s22, 1
        %s255 = smul.addr %s254, 4
        %s256 = scalar_lea.vmem %s1, %s255
        %p257 = pneg %p69
        %p258 = pneg %p66
        %p259 = pneg %p90
        %p260 = pneg %p87
        %p261 = pneg %p111
        %p262 = pneg %p108
        %p263 = pneg %p132
        %p264 = pneg %p129
        %p265 = pneg %p158
        %p266 = pneg %p155
        %s267 = sand.u32 %s145, 1
        %s268 = scalar_lea.sflag [#allocation4], %s267
        %s269 = sand.u32 %s145, 1
        %s270 = smul.addr %s269, 8
        %s271 = scalar_lea.vmem [#allocation5], %s270
        %p272 = pneg %p184
        %p273 = pneg %p181
        %p274 = scmp.lt.s32.totalorder %s22, 1
        %s275 = scalar_select %p274, %s22, 1
        %s276 = smul.addr %s275, 8
        %s277 = scalar_lea.vmem %s6, %s276
        %p278 = scmp.lt.s32.totalorder %s22, 1
        %s279 = scalar_select %p278, %s22, 1
        %s280 = smul.addr %s279, 4
        %s281 = scalar_lea.vmem %s0, %s280
        %p282 = scmp.lt.s32.totalorder %s22, 1
        %s283 = scalar_select %p282, %s22, 1
        %s284 = smul.addr %s283, 4
        %s285 = scalar_lea.vmem %s1, %s284
        %p286 = scmp.lt.s32.totalorder %s22, 1
        %s287 = scalar_select %p286, %s22, 1
        %s288 = smul.addr %s287, 8
        %s289 = scalar_lea.vmem %s6, %s288
        %v291 = vld [vmem:[%s281] sm:$0xf]
        %v292 = vld [vmem:[%s285] sm:$0xf]
        %v293 = vld [vmem:[#allocation2] sm:$0xf]
        %v294 = vld [vmem:[#allocation2 + $0x4] sm:$0xf]
        %v295 = vld [vmem:[#allocation2 + $0x8] sm:$0xf]
        %v296 = vld [vmem:[#allocation2 + $0xc] sm:$0xf]
        %v297 = vld [vmem:[%s3] sm:$0x7]
        %vm298 = vcmask 39936
        %v300 = vsel %vm298, %v292, 0
        %vm302 = vcmask 1041408
        %vm303 = vcmask 1042432
        %v304 = vsel %vm302, 4294967295, 65535
        %v305 = vsel %vm303, %v304, 0
        %v307 = vand.u32 %v297, %v305
        %309 = vmatprep.subr.bf16.mxu0 0
        %310 = vmatpush1.bf16.msra.mxu0 0
        %311 = vmatprep.subr.bf16.mxu0 0
        %312 = vmatpush1.bf16.msra.mxu0 0
        %313 = vmatprep.subr.bf16.mxu0 0
        %314 = vmatpush1.bf16.msra.mxu0 0
        %315 = vmatprep.subr.bf16.mxu0 0
        %316 = vmatpush1.bf16.msra.mxu0 0
        %317 = vmatprep.subr.bf16.mxu0 0
        %318 = vmatpush1.bf16.msra.mxu0 0
        %319 = vmatprep.subr.bf16.mxu0 0
        %320 = vmatpush1.bf16.msra.mxu0 0
        %321 = vmatprep.subr.bf16.mxu0 0
        %322 = vmatpush1.bf16.msra.mxu0 0
        %323 = vmatprep.subr.bf16.mxu0 0
        %324 = vmatpush1.bf16.msra.mxu0 %v307
        %325 = vmatprep.subr.bf16.mxu0 0
        %326 = vmatpush2.bf16.msra.mxu0 0
        %327 = vmatprep.subr.bf16.mxu0 0
        %328 = vmatpush2.bf16.msra.mxu0 0
        %329 = vmatprep.subr.bf16.mxu0 0
        %330 = vmatpush2.bf16.msra.mxu0 0
        %331 = vmatprep.subr.bf16.mxu0 0
        %332 = vmatpush2.bf16.msra.mxu0 0
        %333 = vmatprep.subr.bf16.mxu0 0
        %334 = vmatpush2.bf16.msra.mxu0 0
        %335 = vmatprep.subr.bf16.mxu0 0
        %336 = vmatpush2.bf16.msra.mxu0 0
        %337 = vmatprep.subr.bf16.mxu0 0
        %338 = vmatpush2.bf16.msra.mxu0 0
        %339 = vmatprep.subr.bf16.mxu0 0
        %340 = vmatpush2.bf16.msra.mxu0 0
        %341 = vmatprep.mubr.bf16.mxu0 0
        %342 = vmatmul.mubr.bf16.gmra.mxu0 %v300
        %v343 = vpop.f32.mrf.mxu0
        %v344 = vadd.f32 0.0, %v343
        %v345 = vpop.f32.mrf.mxu0
        %v346 = vpop.f32.mrf.mxu0
        %v347 = vpop.f32.mrf.mxu0
        %348 = vdwg.mxu0
        %v353 = vunpack.c.l.b16 %v293
        %v354 = vunpack.c.l.b16 %v294
        %v355 = vunpack.c.l.b16 %v295
        %v356 = vunpack.c.l.b16 %v296
        %v357 = vpack.c.b16 %v354, %v353
        %v358 = vpack.c.b16 %v356, %v355
        %vm361 = vcmask 261120
        %v363 = vsel %vm361, %v291, 0
        %365 = vmatprep.subr.bf16.mxu0 0
        %366 = vmatpush1.bf16.msra.mxu0 0
        %367 = vmatprep.subr.bf16.mxu0 0
        %368 = vmatpush1.bf16.msra.mxu0 0
        %369 = vmatprep.subr.bf16.mxu0 0
        %370 = vmatpush1.bf16.msra.mxu0 0
        %371 = vmatprep.subr.bf16.mxu0 0
        %372 = vmatpush1.bf16.msra.mxu0 0
        %373 = vmatprep.subr.bf16.mxu0 0
        %374 = vmatpush1.bf16.msra.mxu0 0
        %375 = vmatprep.subr.bf16.mxu0 0
        %376 = vmatpush1.bf16.msra.mxu0 0
        %377 = vmatprep.subr.bf16.mxu0 0
        %378 = vmatpush1.bf16.msra.mxu0 %v358
        %379 = vmatprep.subr.bf16.mxu0 0
        %380 = vmatpush1.bf16.msra.mxu0 %v357
        %381 = vmatprep.subr.bf16.mxu0 0
        %382 = vmatpush2.bf16.msra.mxu0 0
        %383 = vmatprep.subr.bf16.mxu0 0
        %384 = vmatpush2.bf16.msra.mxu0 0
        %385 = vmatprep.subr.bf16.mxu0 0
        %386 = vmatpush2.bf16.msra.mxu0 0
        %387 = vmatprep.subr.bf16.mxu0 0
        %388 = vmatpush2.bf16.msra.mxu0 0
        %389 = vmatprep.subr.bf16.mxu0 0
        %390 = vmatpush2.bf16.msra.mxu0 0
        %391 = vmatprep.subr.bf16.mxu0 0
        %392 = vmatpush2.bf16.msra.mxu0 0
        %393 = vmatprep.subr.bf16.mxu0 0
        %394 = vmatpush2.bf16.msra.mxu0 0
        %395 = vmatprep.subr.bf16.mxu0 0
        %396 = vmatpush2.bf16.msra.mxu0 0
        %397 = vmatprep.mubr.bf16.mxu0 0
        %398 = vmatmul.mubr.bf16.gmra.mxu0 %v363
        %v399 = vpop.f32.mrf.mxu0
        %v400 = vadd.f32 %v344, %v399
        %v401 = vpop.f32.mrf.mxu0
        %v402 = vpop.f32.mrf.mxu0
        %v403 = vpop.f32.mrf.mxu0
        %404 = vdwg.mxu0
        %v405 = vld [vmem:[%s4] sm:$0x1]
        %v407 = vlaneseq
        %v408 = vshrl.u32 %v407, 7
        %v409 = vsub.s32 0, %v408
        %v410 = vrot.slane %v405, %v409
        %v412 = vadd.f32 %v400, %v410
        %413 = vst.msk [vmem:[%s271] sm:$0xff] %vm361, %v412
        %v414 = vunpack.c.l.bf16 %v291
        %v415 = vand.u32 2147483647, %v414
        %v416 = vsel %vm361, %v415, 0.0
        %417 = vadd.xlane.f32.xlu0 %v416
        %v418 = vpop.xlane.xlu0 %417
        %vm419 = vcmask 7168
        %420 = vst.msk [vmem:[%s289] sm:$0xff] %vm419, %v418
        %s421 = sand.u32 %s145, 1
        %s422 = scalar_lea.sflag [#allocation4], %s421
        %s423 = sand.u32 %s145, 1
        %s424 = smul.addr %s423, 8
        %s425 = scalar_lea.vmem [#allocation5], %s424
        %p426 = scmp.lt.s32.totalorder %s22, 1
        %s427 = scalar_select %p426, %s22, 1
        %s428 = smul.addr %s427, 8
        %s429 = scalar_lea.vmem %s6, %s428
        // Predicated region
        $region45: #{tpu_custom_call.1} parent=39 // pred_check
          %p430 = pneg %p155
        $region46: #{tpu_custom_call.1} parent=39 // pred_check_branch
          %432 = sbr.rel (%p430) target = $region48
        $region47: #{tpu_custom_call.1} parent=39 // pred_region
          %s434 = ssub.s32 128, 128
          %435 = vsyncadd %s422, %s434
          %s436 = smul.addr %s22, 128
          %s437 = scalar_lea.hbm %s5, %s436
          %s439 = sshll.u32 %s425, 4
          %s440 = int_to_ptr.vmem [resolvable:$true] %s439
          %442 = dma.vmem_to_hbm [thread:$0]  %s440, 128, %s437, %s422
        $region48: #{tpu_custom_call.1} parent=39 // pred_fallthru
          _
        // Predicated region
        $region49: #{tpu_custom_call.1} parent=39 // pred_check
          %p443 = pneg %p181
        $region50: #{tpu_custom_call.1} parent=39 // pred_check_branch
          %445 = sbr.rel (%p443) target = $region52
        $region51: #{tpu_custom_call.1} parent=39 // pred_region
          _
        $region52: #{tpu_custom_call.1} parent=39 // pred_fallthru
          _
      $region40: #{tpu_custom_call.1} parent=5 // pred_fallthru
        _
      %p446 = scmp.le.s32.totalorder 2, %s17
      // Predicated region
      $region53: #{tpu_custom_call.1} parent=5 // pred_check
        %p447 = pneg %p446
      $region54: #{tpu_custom_call.1} parent=5 // pred_check_branch
        %449 = sbr.rel (%p447) target = $region56
      $region55: #{tpu_custom_call.1} parent=5 // pred_region
        %s450 = ssub.s32 %s17, 2
        // Predicated region
        $region57: #{tpu_custom_call.1} parent=55 // pred_check
          %p451 = pneg %p161
        $region58: #{tpu_custom_call.1} parent=55 // pred_check_branch
          %453 = sbr.rel (%p451) target = $region60
        $region59: #{tpu_custom_call.1} parent=55 // pred_region
          %s454 = sand.u32 %s146, 1
          %s455 = scalar_lea.sflag [#allocation4], %s454
          %s456 = sand.u32 %s146, 1
          %s457 = smul.addr %s456, 8
          %s458 = scalar_lea.vmem [#allocation5], %s457
          %459 = dma.done %s455, 128
        $region60: #{tpu_custom_call.1} parent=55 // pred_fallthru
          _
        // Predicated region
        $region61: #{tpu_custom_call.1} parent=55 // pred_check
          %p460 = pneg %p187
        $region62: #{tpu_custom_call.1} parent=55 // pred_check_branch
          %462 = sbr.rel (%p460) target = $region64
        $region63: #{tpu_custom_call.1} parent=55 // pred_region
          %p463 = scmp.lt.s32.totalorder %s23, 1
          %s464 = scalar_select %p463, %s23, 1
          %s465 = smul.addr %s464, 8
          %s466 = scalar_lea.vmem %s6, %s465
        $region64: #{tpu_custom_call.1} parent=55 // pred_fallthru
          _
      $region56: #{tpu_custom_call.1} parent=5 // pred_fallthru
        _
    $region6: #{tpu_custom_call.1} parent=1 // loop_footer
      %s21 = sadd.s32 1, %s17
    $region7: #{tpu_custom_call.1} parent=1 // loop_footer_branch
      %16 = sbr.rel target = $region3
    $region8: #{tpu_custom_call.1} parent=1 // loop_exit
      _
    %467 = vsyncpa [#allocation3], 1
    %s468 = scalar_lea.sflag [#allocation3], 1
    %469 = vsyncpa %s468, 1
    %470 = vsyncpa [#allocation4], 1
    %s471 = scalar_lea.sflag [#allocation4], 1
    %472 = vsyncpa %s471, 1

</llo_original>
